<compile_context>
chip_gen: v7x
topology: tpu7x:2x2x1
jax: 0.10.0
libtpu: 0.0.40
codegen_flags: <defaults>
</compile_context>

<pallas_src>
import functools

import jax
import jax.numpy as jnp
from jax.experimental import pallas as pl
from jax.experimental.pallas import tpu as pltpu

# args.min_variance is not defined in the source snippet; fixed deterministically here.
MIN_VARIANCE = 1e-3   # stand-in for args.min_variance
SOFTMAX_EPS = 1e-5    # default eps of adf.Softmax.forward
LOSS_EPS = 1e-5       # default eps of SoftmaxHeteroscedasticLoss.forward

_PARTIAL_BLOCK = (1, 8, 128)   # full-vreg per-tile partial-sum block (unmasked store)


def _round_up(x, m):
    return (x + m - 1) // m * m


def _het_loss_tile_kernel(mean_ref, var_ref, labels_ref, partial_ref, *, n_cols, tile_n, ragged):
    # Lane-dense layout: class dim on sublanes, batch dim on lanes.
    m = mean_ref[...].astype(jnp.float32)      # (C, T)
    v = var_ref[...].astype(jnp.float32)       # (C, T)
    labels = labels_ref[...]                   # (1, T) int32 class index per batch element
    c, t = m.shape

    # --- ADF softmax (log-normal approximation), matching adf.Softmax ---
    # TODO(synk): no max-subtraction stabilization (matches the PyTorch reference bit pattern);
    # exp(2*(m+0.5v)) overflows f32 for m+0.5v >~ 44, exactly as the reference would.
    lg = m + 0.5 * v
    e = jnp.exp(lg)                            # reuse: exp(2*lg) == e*e  (one fewer EUP exp)
    lg_mean = e
    # TODO(synk): jnp.expm1(v) is more accurate for tiny variances but deviates from exp(v)-1.
    lg_var = (e * e) * (jnp.exp(v) - 1.0)

    constant = jnp.sum(lg_mean, axis=0, keepdims=True) + SOFTMAX_EPS   # (1, T) sublane reduce
    inv_c = pl.reciprocal(constant)            # exact; one per batch element (1/C of elements)
    out_mean = lg_mean * inv_c
    out_var = lg_var * (inv_c * inv_c) + MIN_VARIANCE                  # keep_variance_fn

    # --- loss terms; one-hot never materialized, 0.5's folded into the wrapper divisor ---
    cls = jax.lax.broadcasted_iota(jnp.int32, (c, t), 0)               # class index per sublane
    diff = jnp.where(cls == labels, 1.0 - out_mean, -out_mean)

    var_eps = out_var + LOSS_EPS
    r0 = pl.reciprocal(var_eps, approx=True)   # cheap EUP vrcp ...
    precision = r0 * (2.0 - var_eps * r0)      # ... + one Newton step on the VPU (rel err ~1e-8)
    elem = precision * diff * diff + jnp.log(var_eps)

    def _emit(x):
        partial_ref[...] = jnp.full(_PARTIAL_BLOCK, jnp.sum(x), dtype=jnp.float32)

    if not ragged:
        _emit(elem)
    else:
        i = pl.program_id(0)
        last = pl.num_programs(0) - 1

        @pl.when(i < last)
        def _():
            _emit(elem)

        @pl.when(i == last)
        def _():
            # Mask lanes beyond the true batch; pad columns hold undefined data so the
            # select must happen BEFORE the sum (discards any NaN/Inf from pad lanes).
            col = i * tile_n + jax.lax.broadcasted_iota(jnp.int32, (c, t), 1)
            _emit(jnp.where(col < n_cols, elem, 0.0))


def softmax_heteroscedastic_loss(outputs_mean, outputs_var, labels, *, tile_n=None):
    """outputs_mean, outputs_var: (N, C) float (f32 or bf16); labels: (N,) int. Scalar f32 loss."""
    n, c = outputs_mean.shape

    # Lane-dense repack: with C << 128 a (N, C) block wastes (128-C)/128 of every vreg and
    # VMEM row.  Transposed to (C, N), the batch maps to the 128-lane axis and the class dim
    # only pads to 8 sublanes.
    mean_t = outputs_mean.T
    var_t = outputs_var.T
    labels_row = labels.astype(jnp.int32).reshape(1, n)

    try:
        vmem_cap = int(pltpu.get_tpu_info().vmem_capacity_bytes)
    except Exception:
        vmem_cap = 64 << 20                        # conservative default (v7x per-TC VMEM)

    c_pad = _round_up(max(c, 1), 8)                # class dim pads to the 8-sublane tile
    in_itemsize = jnp.dtype(outputs_mean.dtype).itemsize

    if tile_n is None:
        per_lane = (
            2 * 2 * c_pad * in_itemsize            # 2 tiled inputs x 2 pipeline buffers
            + 2 * 8 * 4                            # labels block: (1,T) i32 pads to 8 sublanes
            + 10 * c_pad * 4                       # ~10 live f32 (C, T) intermediates in body
        )
        tile_n = (vmem_cap // 2) // per_lane       # keep the pipeline within ~half of VMEM
    tile_n = int(tile_n)
    if tile_n < n:
        tile_n = max(128, min(tile_n, 16384))
        tile_n = (tile_n // 128) * 128             # lane-aligned batch tiles
    if tile_n >= n:
        tile_n = n                                 # single block covering the full batch

    grid_n = pl.cdiv(n, tile_n)
    ragged = (n % tile_n) != 0
    kernel = functools.partial(_het_loss_tile_kernel, n_cols=n, tile_n=tile_n, ragged=ragged)

    partials = pl.pallas_call(
        kernel,
        grid=(grid_n,),
        out_shape=jax.ShapeDtypeStruct((grid_n, 8, 128), jnp.float32),
        in_specs=[
            pl.BlockSpec((c, tile_n), lambda i: (0, i)),
            pl.BlockSpec((c, tile_n), lambda i: (0, i)),
            pl.BlockSpec((1, tile_n), lambda i: (0, i)),
        ],
        out_specs=pl.BlockSpec((1, 8, 128), lambda i: (i, 0, 0)),
        compiler_params=pltpu.CompilerParams(
            # TODO(synk): on v7x use pltpu.CORE_PARALLEL here to guarantee 2-TC sharding; plain
            # "parallel" is kept for portability across v5e/v6e single-TC parts.
            dimension_semantics=("parallel",),
            vmem_limit_bytes=int(min(vmem_cap * 3 // 4, 96 << 20)),
        ),
    )(mean_t, var_t, labels_row)

    # Tiny final reduction outside the kernel; the two 0.5 factors are folded into the divisor.
    return jnp.sum(partials[:, 0, 0]) / (2.0 * n * c)


def _reference(outputs_mean, outputs_var, labels):
    m = outputs_mean.astype(jnp.float32)
    v = outputs_var.astype(jnp.float32)
    lg_mean = m + 0.5 * v
    lg_var = jnp.exp(2.0 * lg_mean) * (jnp.exp(v) - 1.0)
    lg_mean = jnp.exp(lg_mean)
    const = jnp.sum(lg_mean, axis=1, keepdims=True) + SOFTMAX_EPS
    out_mean = lg_mean / const
    out_var = lg_var / const**2 + MIN_VARIANCE
    targets = jax.nn.one_hot(labels, m.shape[1], dtype=jnp.float32)
    precision = 1.0 / (out_var + LOSS_EPS)
    return jnp.mean(0.5 * precision * (targets - out_mean) ** 2
                    + 0.5 * jnp.log(out_var + LOSS_EPS))


if __name__ == "__main__":
    C = 10
    key = jax.random.PRNGKey(0)
    k1, k2, k3, k4, k5, k6 = jax.random.split(key, 6)

    # Case 1: CIFAR-10-like toy batch (20 examples, 10 classes) -> single (C, N) tile.
    N1 = 20
    mean1 = jax.random.normal(k1, (N1, C), dtype=jnp.float32)
    var1 = 0.1 * jnp.abs(jax.random.normal(k2, (N1, C), dtype=jnp.float32)) + 1e-3  # positive
    lab1 = jax.random.randint(k3, (N1,), 0, C, dtype=jnp.int32)
    ref1 = _reference(mean1, var1, lab1)
    out1 = jax.block_until_ready(softmax_heteroscedastic_loss(mean1, var1, lab1))
    assert jnp.allclose(out1, ref1, rtol=1e-5, atol=1e-5), (out1, ref1)

    # Case 2: multi-step grid with a ragged, masked last tile (300 lanes = 128 + 128 + 44).
    N2 = 300
    mean2 = jax.random.normal(k4, (N2, C), dtype=jnp.float32)
    var2 = 0.1 * jnp.abs(jax.random.normal(k5, (N2, C), dtype=jnp.float32)) + 1e-3
    lab2 = jax.random.randint(k6, (N2,), 0, C, dtype=jnp.int32)
    ref2 = _reference(mean2, var2, lab2)
    out2 = jax.block_until_ready(
        softmax_heteroscedastic_loss(mean2, var2, lab2, tile_n=128))
    assert jnp.allclose(out2, ref2, rtol=1e-5, atol=1e-5), (out2, ref2)

    # Case 3: same data, auto tile size (single tile covering the full batch).
    out3 = jax.block_until_ready(softmax_heteroscedastic_loss(mean2, var2, lab2))
    assert jnp.allclose(out3, ref2, rtol=1e-5, atol=1e-5), (out3, ref2)

    print("KERNEL_OK")
</pallas_src>

<mosaic_0001>
module attributes {stable_mosaic.version = 11 : i64} {
  func.func @_het_loss_tile_kernel(%arg0: i32, %arg1: memref<10x20xf32, #tpu.memory_space<vmem>>, %arg2: memref<10x20xf32, #tpu.memory_space<vmem>>, %arg3: memref<1x20xi32, #tpu.memory_space<vmem>>, %arg4: memref<1x8x128xf32, #tpu.memory_space<vmem>>) attributes {dimension_semantics = [#tpu.dimension_semantics<parallel>], iteration_bounds = array<i64: 1>, scalar_prefetch = 0 : i64, scratch_operands = 0 : i64, tpu.core_type = #tpu.core_type<tc>, window_params = [{transform_indices = @transform_0, window_bounds = array<i64: 10, 20>}, {transform_indices = @transform_1, window_bounds = array<i64: 10, 20>}, {transform_indices = @transform_2, window_bounds = array<i64: 1, 20>}, {transform_indices = @transform_3, window_bounds = array<i64: 1, 8, 128>}]} {
    %c0 = arith.constant 0 : index
    %c0_0 = arith.constant 0 : index
    %0 = vector.load %arg1[%c0, %c0_0] : memref<10x20xf32, #tpu.memory_space<vmem>>, vector<10x20xf32>
    %c0_1 = arith.constant 0 : index
    %c0_2 = arith.constant 0 : index
    %1 = vector.load %arg2[%c0_1, %c0_2] : memref<10x20xf32, #tpu.memory_space<vmem>>, vector<10x20xf32>
    %c0_3 = arith.constant 0 : index
    %c0_4 = arith.constant 0 : index
    %2 = vector.load %arg3[%c0_3, %c0_4] : memref<1x20xi32, #tpu.memory_space<vmem>>, vector<1x20xi32>
    %cst = arith.constant 5.000000e-01 : f32
    %3 = vector.broadcast %cst : f32 to vector<10x20xf32>
    %4 = arith.mulf %3, %1 : vector<10x20xf32>
    %5 = arith.addf %0, %4 : vector<10x20xf32>
    %6 = math.exp %5 : vector<10x20xf32>
    %7 = arith.mulf %6, %6 : vector<10x20xf32>
    %8 = math.exp %1 : vector<10x20xf32>
    %cst_5 = arith.constant 1.000000e+00 : f32
    %9 = vector.broadcast %cst_5 : f32 to vector<10x20xf32>
    %10 = arith.subf %8, %9 : vector<10x20xf32>
    %11 = arith.mulf %7, %10 : vector<10x20xf32>
    %cst_6 = arith.constant dense<0.000000e+00> : vector<20xf32>
    %12 = vector.multi_reduction <add>, %6, %cst_6 [0] : vector<10x20xf32> to vector<20xf32>
    %13 = vector.shape_cast %12 : vector<20xf32> to vector<1x20xf32>
    %cst_7 = arith.constant 9.99999974E-6 : f32
    %14 = vector.broadcast %cst_7 : f32 to vector<1x20xf32>
    %15 = arith.addf %13, %14 : vector<1x20xf32>
    %16 = tpu.reciprocal %15 : vector<1x20xf32> -> vector<1x20xf32>
    %17 = vector.broadcast %16 : vector<1x20xf32> to vector<10x20xf32>
    %18 = arith.mulf %6, %17 : vector<10x20xf32>
    %19 = arith.mulf %16, %16 : vector<1x20xf32>
    %20 = vector.broadcast %19 : vector<1x20xf32> to vector<10x20xf32>
    %21 = arith.mulf %11, %20 : vector<10x20xf32>
    %cst_8 = arith.constant 1.000000e-03 : f32
    %22 = vector.broadcast %cst_8 : f32 to vector<10x20xf32>
    %23 = arith.addf %21, %22 : vector<10x20xf32>
    %24 = tpu.iota {dimensions = array<i32: 0>} : vector<10x20xi32>
    %25 = vector.broadcast %2 : vector<1x20xi32> to vector<10x20xi32>
    %26 = arith.cmpi eq, %24, %25 : vector<10x20xi32>
    %cst_9 = arith.constant 1.000000e+00 : f32
    %27 = vector.broadcast %cst_9 : f32 to vector<10x20xf32>
    %28 = arith.subf %27, %18 : vector<10x20xf32>
    %cst_10 = arith.constant 0.000000e+00 : f32
    %29 = vector.broadcast %cst_10 : f32 to vector<10x20xf32>
    %30 = arith.subf %29, %18 : vector<10x20xf32>
    %31 = arith.select %26, %28, %30 : vector<10x20xi1>, vector<10x20xf32>
    %cst_11 = arith.constant 9.99999974E-6 : f32
    %32 = vector.broadcast %cst_11 : f32 to vector<10x20xf32>
    %33 = arith.addf %23, %32 : vector<10x20xf32>
    %34 = tpu.reciprocal %33 {approx = true} : vector<10x20xf32> -> vector<10x20xf32>
    %35 = arith.mulf %33, %34 : vector<10x20xf32>
    %cst_12 = arith.constant 2.000000e+00 : f32
    %36 = vector.broadcast %cst_12 : f32 to vector<10x20xf32>
    %37 = arith.subf %36, %35 : vector<10x20xf32>
    %38 = arith.mulf %34, %37 : vector<10x20xf32>
    %39 = arith.mulf %38, %31 : vector<10x20xf32>
    %40 = arith.mulf %39, %31 : vector<10x20xf32>
    %41 = math.log %33 : vector<10x20xf32>
    %42 = arith.addf %40, %41 : vector<10x20xf32>
    %43 = vector.shape_cast %42 : vector<10x20xf32> to vector<1x10x20xf32>
    %cst_13 = arith.constant dense<0.000000e+00> : vector<1xf32>
    %44 = vector.multi_reduction <add>, %43, %cst_13 [1, 2] : vector<1x10x20xf32> to vector<1xf32>
    %45 = vector.shape_cast %44 : vector<1xf32> to vector<1x1x1xf32>
    %46 = vector.extract %45[0, 0, 0] : f32 from vector<1x1x1xf32>
    %47 = vector.broadcast %46 : f32 to vector<1x8x128xf32>
    %c0_14 = arith.constant 0 : index
    %c0_15 = arith.constant 0 : index
    %c0_16 = arith.constant 0 : index
    %48 = vector.load %arg4[%c0_14, %c0_15, %c0_16] : memref<1x8x128xf32, #tpu.memory_space<vmem>>, vector<1x8x128xf32>
    tpu.vector_store %arg4[%c0_14, %c0_15, %c0_16], %47 {strides = array<i32>} : memref<1x8x128xf32, #tpu.memory_space<vmem>>, vector<1x8x128xf32>,
    return
  }
  func.func @transform_0(%arg0: i32) -> (i32, i32) {
    %c0_i32 = arith.constant 0 : i32
    %c0_i32_0 = arith.constant 0 : i32
    return %c0_i32, %arg0 : i32, i32
  }
  func.func @transform_1(%arg0: i32) -> (i32, i32) {
    %c0_i32 = arith.constant 0 : i32
    %c0_i32_0 = arith.constant 0 : i32
    return %c0_i32, %arg0 : i32, i32
  }
  func.func @transform_2(%arg0: i32) -> (i32, i32) {
    %c0_i32 = arith.constant 0 : i32
    %c0_i32_0 = arith.constant 0 : i32
    return %c0_i32, %arg0 : i32, i32
  }
  func.func @transform_3(%arg0: i32) -> (i32, i32, i32) {
    %c0_i32 = arith.constant 0 : i32
    %c0_i32_0 = arith.constant 0 : i32
    %c0_i32_1 = arith.constant 0 : i32
    return %arg0, %c0_i32, %c0_i32_0 : i32, i32, i32
  }
}

</mosaic_0001>

<llo_original>
// kernel: tpu_custom_call.1
$region0: #{tpu_custom_call.1}
  #allocation0 [shape = 'u32[]', space=smem, size = 0x4, offset = 0x4, fixed_abs, tag = 'smem constant byte address 0x4 - core index']
  #allocation1 [shape = 'u32[144,128]{1,0:T(1,128)}', space=vmem, size = 0x12000, scoped, tag = 'internal scratch']
  %s0 = inlined_call_operand.hbm [shape: f32[10,20], index: 0, kind: input, shape index: {}]
  %s1 = inlined_call_operand.hbm [shape: f32[10,20], index: 1, kind: input, shape index: {}]
  %s2 = inlined_call_operand.vmem [shape: s32[1,20], index: 2, kind: input, shape index: {}]
  %s3 = inlined_call_operand.hbm [shape: f32[1,8,128], index: 3, kind: output, shape index: {}]
  %s4 = sld [smem:[#allocation0]]
  $region30: #{tpu_custom_call.1} parent=0
    _
  %s6 = ssub.s32 1, %s4
  %s7 = scalar_select 0, %s6, %s4
  $region1: #{tpu_custom_call.1} parent=0
    #allocation2 [shape = 'u8[8192]{0}', space=vmem, size = 0x2000, scoped, tag = 'input window, operand 0, single buffered']
    #allocation3 [shape = 's32[1]{0}', space=sflag, size = 0x4, scoped, tag = 'scoped memory for tpu_custom_call.1']
    #allocation4 [shape = 's32[1]{0}', space=sflag, size = 0x4, scoped, tag = 'scoped memory for tpu_custom_call.1']
    #allocation5 [shape = 'u8[8192]{0}', space=vmem, size = 0x2000, scoped, tag = 'input window, operand 1, single buffered']
    #allocation6 [shape = 's32[1]{0}', space=sflag, size = 0x4, scoped, tag = 'scoped memory for tpu_custom_call.1']
    #allocation7 [shape = 'u8[4096]{0}', space=vmem, size = 0x1000, scoped, tag = 'output window, operand 0, single buffered']
    %8 = vsyncpa [#allocation3], 0
    %9 = vsyncpa [#allocation6], 0
    %10 = vsyncpa [#allocation4], 0
    // Predicated region
    $region2: #{tpu_custom_call.1} parent=1 // pred_check
      _
    $region3: #{tpu_custom_call.1} parent=1 // pred_check_branch
      %12 = sbr.rel (0) target = $region5
    $region4: #{tpu_custom_call.1} parent=1 // pred_region
      %s14 = ssub.s32 256, 256
      %15 = vsyncadd [#allocation3], %s14
      %s16 = sshll.u32 [#allocation2], 4
      %s17 = int_to_ptr.vmem [resolvable:$true] %s16
      %22 = dma.hbm_to_vmem [thread:$0]  %s0, 256, %s17, [#allocation3], 128, 128, 8
    $region5: #{tpu_custom_call.1} parent=1 // pred_fallthru
      _
    // Predicated region
    $region6: #{tpu_custom_call.1} parent=1 // pred_check
      _
    $region7: #{tpu_custom_call.1} parent=1 // pred_check_branch
      %24 = sbr.rel (0) target = $region9
    $region8: #{tpu_custom_call.1} parent=1 // pred_region
      %s26 = ssub.s32 256, 256
      %27 = vsyncadd [#allocation6], %s26
      %s28 = sshll.u32 [#allocation5], 4
      %s29 = int_to_ptr.vmem [resolvable:$true] %s28
      %34 = dma.hbm_to_vmem [thread:$0]  %s1, 256, %s29, [#allocation6], 128, 128, 8
    $region9: #{tpu_custom_call.1} parent=1 // pred_fallthru
      _
    // Predicated region
    $region10: #{tpu_custom_call.1} parent=1 // pred_check
      _
    $region11: #{tpu_custom_call.1} parent=1 // pred_check_branch
      %36 = sbr.rel (0) target = $region13
    $region12: #{tpu_custom_call.1} parent=1 // pred_region
      _
    $region13: #{tpu_custom_call.1} parent=1 // pred_fallthru
      _
    // Predicated region
    $region14: #{tpu_custom_call.1} parent=1 // pred_check
      _
    $region15: #{tpu_custom_call.1} parent=1 // pred_check_branch
      %38 = sbr.rel (0) target = $region17
    $region16: #{tpu_custom_call.1} parent=1 // pred_region
      %39 = dma.done [#allocation3], 256
    $region17: #{tpu_custom_call.1} parent=1 // pred_fallthru
      _
    // Predicated region
    $region18: #{tpu_custom_call.1} parent=1 // pred_check
      _
    $region19: #{tpu_custom_call.1} parent=1 // pred_check_branch
      %41 = sbr.rel (0) target = $region21
    $region20: #{tpu_custom_call.1} parent=1 // pred_region
      %42 = dma.done [#allocation6], 256
    $region21: #{tpu_custom_call.1} parent=1 // pred_fallthru
      _
    %v43 = vld [vmem:[#allocation2] sm:$0xff]
    %v44 = vld [vmem:[#allocation2 + $0x8] sm:$0x3]
    %v45 = vld [vmem:[#allocation5] sm:$0xff]
    %v46 = vld [vmem:[#allocation5 + $0x8] sm:$0x3]
    %v47 = vld [vmem:[%s2] sm:$0x1]
    %v48 = vmul.f32 %v45, 0.5
    %v49 = vmul.f32 %v46, 0.5
    %v50 = vadd.f32 %v43, %v48
    %v51 = vadd.f32 %v44, %v49
    %v52 = vmul.f32 %v50, 1.442695
    %v53 = vpow.pop %v52
    %v54 = vmul.f32 %v51, 1.442695
    %v55 = vpow.pop %v54
    %v56 = vmul.f32 %v53, %v53
    %v57 = vmul.f32 %v55, %v55
    %v58 = vmul.f32 %v45, 1.442695
    %v59 = vpow.pop %v58
    %v60 = vmul.f32 %v46, 1.442695
    %v61 = vpow.pop %v60
    %v62 = vsub.f32 %v59, 1.0
    %v63 = vsub.f32 %v61, 1.0
    %v64 = vmul.f32 %v56, %v62
    %v65 = vmul.f32 %v57, %v63
    %vm66 = vcmask 162816
    %v67 = vsel %vm66, %v53, 0.0
    %vm68 = vcmask 156672
    %v69 = vsel %vm68, %v55, 0.0
    %v70 = vadd.f32 %v67, %v69
    %v71 = vrot.slane %v70, 4
    %v72 = vadd.f32 %v70, %v71
    %v73 = vrot.slane %v72, 2
    %v74 = vadd.f32 %v72, %v73
    %v75 = vrot.slane %v74, 1
    %v76 = vadd.f32 %v74, %v75
    %v77 = vadd.f32 %v76, 1e-05
    %v78 = vrcp.pop %v77
    %v79 = vmul.f32 %v53, %v78
    %v80 = vmul.f32 %v55, %v78
    %v81 = vmul.f32 %v78, %v78
    %v82 = vmul.f32 %v64, %v81
    %v83 = vmul.f32 %v65, %v81
    %v84 = vadd.f32 %v82, 0.001
    %v85 = vadd.f32 %v83, 0.001
    %v86 = vlaneseq
    %v87 = vshrl.u32 %v86, 7
    %v88 = vadd.s32 %v87, 8
    %v89 = vlaneseq
    %v90 = vshrl.u32 %v89, 7
    %v91 = vsub.s32 0, %v90
    %v92 = vrot.slane %v47, %v91
    %vm93 = vcmp.eq.s32.totalorder %v87, %v92
    %vm94 = vcmp.eq.s32.totalorder %v88, %v92
    %v95 = vsub.f32 1.0, %v79
    %v96 = vsub.f32 1.0, %v80
    %v97 = vsub.f32 0.0, %v79
    %v98 = vsub.f32 0.0, %v80
    %v99 = vsel %vm93, %v95, %v97
    %v100 = vsel %vm94, %v96, %v98
    %v101 = vadd.f32 %v84, 1e-05
    %v102 = vadd.f32 %v85, 1e-05
    %v103 = vrcp.pop %v101
    %v104 = vrcp.pop %v102
    %v105 = vmul.f32 %v101, %v103
    %v106 = vmul.f32 %v102, %v104
    %v107 = vsub.f32 2.0, %v105
    %v108 = vsub.f32 2.0, %v106
    %v109 = vmul.f32 %v103, %v107
    %v110 = vmul.f32 %v104, %v108
    %v111 = vmul.f32 %v109, %v99
    %v112 = vmul.f32 %v110, %v100
    %v113 = vmul.f32 %v111, %v99
    %v114 = vmul.f32 %v112, %v100
    %v115 = vlog2.pop %v101
    %v116 = vmul.f32 %v115, 0.6931472
    %v117 = vlog2.pop %v102
    %v118 = vmul.f32 %v117, 0.6931472
    %v119 = vadd.f32 %v113, %v116
    %v120 = vadd.f32 %v114, %v118
    %v121 = vsel %vm66, %v119, 0.0
    %v122 = vsel %vm68, %v120, 0.0
    %v123 = vadd.f32 %v121, %v122
    %124 = vadd.xlane.f32.xlu0 %v123
    %v125 = vpop.xlane.xlu0 %124
    %v126 = vrot.slane %v125, 4
    %v127 = vadd.f32 %v125, %v126
    %v128 = vrot.slane %v127, 2
    %v129 = vadd.f32 %v127, %v128
    %v130 = vrot.slane %v129, 1
    %v131 = vadd.f32 %v129, %v130
    %s132 = vtos %v131
    %v133 = vstv %s132
    %134 = vst [vmem:[#allocation7] sm:$0xff] %v133
    // Predicated region
    $region22: #{tpu_custom_call.1} parent=1 // pred_check
      _
    $region23: #{tpu_custom_call.1} parent=1 // pred_check_branch
      %136 = sbr.rel (0) target = $region25
    $region24: #{tpu_custom_call.1} parent=1 // pred_region
      %s138 = ssub.s32 128, 128
      %139 = vsyncadd [#allocation4], %s138
      %s141 = sshll.u32 [#allocation7], 4
      %s142 = int_to_ptr.vmem [resolvable:$true] %s141
      %144 = dma.vmem_to_hbm [thread:$0]  %s142, 128, %s3, [#allocation4]
    $region25: #{tpu_custom_call.1} parent=1 // pred_fallthru
      _
    // Predicated region
    $region26: #{tpu_custom_call.1} parent=1 // pred_check
      _
    $region27: #{tpu_custom_call.1} parent=1 // pred_check_branch
      %146 = sbr.rel (0) target = $region29
    $region28: #{tpu_custom_call.1} parent=1 // pred_region
      %147 = dma.done [#allocation4], 128
    $region29: #{tpu_custom_call.1} parent=1 // pred_fallthru
      _
    %148 = vsyncpa [#allocation3], 1
    %149 = vsyncpa [#allocation6], 1
    %150 = vsyncpa [#allocation4], 1

</llo_original>
